<compile_context>
chip_gen: v7x
topology: tpu7x:2x2x1
jax: 0.10.0
libtpu: 0.0.40
codegen_flags: <defaults>
</compile_context>

<pallas_src>
import functools

import jax
import jax.numpy as jnp
from jax.experimental import pallas as pl
from jax.experimental.pallas import tpu as pltpu


_LANE = 128
_SUBLANE = 8
_MIB = 1024 * 1024


def _round_up(x, m):
    return (x + m - 1) // m * m


def _vmem_budgets():
    """(per_input_buffer_bytes, vmem_limit_bytes) derived from hardware."""
    try:
        cap = pltpu.get_tpu_info().vmem_capacity_bytes
    except Exception:  # pragma: no cover - conservative fallback
        cap = 64 * _MIB
    # ~75% of physical VMEM, clamped to [32 MiB, 96 MiB]:
    #   v7x (64 MiB)  -> 48 MiB limit, 12 MiB per input buffer
    #   v5e/v6e (128) -> 96 MiB limit, 24 MiB per input buffer
    vmem_limit = min(max(cap * 3 // 4, 32 * _MIB), 96 * _MIB)
    # Pallas double-buffers the input (2x), leave the rest for output buffers,
    # the f32 scratch accumulator and compiler-internal scratch.
    per_buffer = vmem_limit // 4
    return per_buffer, vmem_limit


def _choose_tiles(rows, hw, itemsize, budget):
    """Pick (tr, thw) block dims for the fused (rows, hw) problem.

    thw == hw means no reduction-axis chunking.  Guarantees the (8, 128)
    BlockSpec rule for input (tr, thw), output (1, tr) and the f32 scratch:
    tr == rows or tr % 128 == 0; thw == hw or thw % 128 == 0.
    Footprint is modeled with lane (128) / sublane (8) padding.
    """
    hw_p = _round_up(hw, _LANE)
    rows_p = _round_up(rows, _SUBLANE)

    # Whole problem in a single block.
    if rows_p * hw_p * itemsize <= budget:
        return rows, hw

    # Full reduction axis per block; tile rows (multiple of 128 so the
    # lane-dense output block stays legal).
    tr = (budget // (hw_p * itemsize)) // _LANE * _LANE
    if tr >= _LANE:
        return min(tr, rows), hw

    # Very large spatial extent: chunk H*W (multiple of 128) and accumulate in
    # an f32 VMEM scratch across an "arbitrary" grid axis.
    tr = rows if rows <= _LANE else _LANE
    tr_p = _round_up(tr, _SUBLANE)
    thw = (budget // (tr_p * itemsize)) // _LANE * _LANE
    thw = max(thw, _LANE)
    thw = min(thw, hw_p)
    if thw >= hw:
        return tr, hw
    return tr, thw


def _gap_kernel(x_ref, o_ref, *, inv_hw):
    # x_ref: (tr, hw); reduce over lanes with f32 accumulation (no f32 copy of
    # the tile is materialized).
    row_sum = jnp.sum(x_ref[...], axis=-1, dtype=jnp.float32)      # (tr,)
    o_ref[...] = (row_sum * inv_hw)[None, :].astype(o_ref.dtype)   # (1, tr)


def _gap_kernel_chunked(x_ref, o_ref, acc_ref, *, inv_hw, hw, needs_mask):
    # Grid: (row_tiles, hw_chunks); the hw-chunk axis is innermost/"arbitrary".
    j = pl.program_id(1)

    @pl.when(j == 0)
    def _():
        acc_ref[...] = jnp.zeros_like(acc_ref)

    x = x_ref[...]
    if needs_mask:
        thw = x_ref.shape[-1]
        lane = jax.lax.broadcasted_iota(jnp.int32, x.shape, dimension=1)
        in_range = (j * thw + lane) < hw
        x = jnp.where(in_range, x, jnp.zeros_like(x))

    acc_ref[...] += jnp.sum(x, axis=-1, dtype=jnp.float32)[None, :]

    @pl.when(j == pl.num_programs(1) - 1)
    def _():
        o_ref[...] = (acc_ref[...] * inv_hw).astype(o_ref.dtype)


def global_avg_pool2d(x, *, max_block_bytes=None):
    """x: (N, C, H, W) -> (N, C, 1, 1), mean over the full spatial extent."""
    n, c, h, w = x.shape
    hw = h * w
    rows = n * c

    x2d = x.reshape(rows, hw)                  # free, contiguous reshape
    per_buffer, vmem_limit = _vmem_budgets()
    if max_block_bytes is not None:            # test hook / manual override
        per_buffer = max_block_bytes
    tr, thw = _choose_tiles(rows, hw, x2d.dtype.itemsize, per_buffer)
    inv_hw = 1.0 / hw

    if thw == hw:
        # Single grid axis over row tiles; full reduction per block.
        grid_spec = pltpu.PrefetchScalarGridSpec(
            num_scalar_prefetch=0,
            grid=(pl.cdiv(rows, tr),),
            in_specs=[pl.BlockSpec((tr, hw), lambda i: (i, 0))],
            out_specs=pl.BlockSpec((1, tr), lambda i: (0, i)),
        )
        kernel = functools.partial(_gap_kernel, inv_hw=inv_hw)
        dims = ("parallel",)
    else:
        # Large H*W: chunk the reduction axis and accumulate in f32 scratch.
        grid_spec = pltpu.PrefetchScalarGridSpec(
            num_scalar_prefetch=0,
            grid=(pl.cdiv(rows, tr), pl.cdiv(hw, thw)),
            in_specs=[pl.BlockSpec((tr, thw), lambda i, j: (i, j))],
            out_specs=pl.BlockSpec((1, tr), lambda i, j: (0, i)),
            scratch_shapes=[pltpu.VMEM((1, tr), jnp.float32)],
        )
        kernel = functools.partial(
            _gap_kernel_chunked,
            inv_hw=inv_hw,
            hw=hw,
            needs_mask=(hw % thw != 0),
        )
        dims = ("parallel", "arbitrary")

    out = pl.pallas_call(
        kernel,
        out_shape=jax.ShapeDtypeStruct((1, rows), x.dtype),
        grid_spec=grid_spec,
        compiler_params=pltpu.CompilerParams(
            dimension_semantics=dims,
            vmem_limit_bytes=vmem_limit,
        ),
    )(x2d)

    return out.reshape(n, c, 1, 1)


if __name__ == "__main__":
    key = jax.random.PRNGKey(0)

    # Small shapes consistent with a conv feature map: N=2, C=4, H=W=16.
    x = jax.random.normal(key, (2, 4, 16, 16), dtype=jnp.float32)
    ref = jnp.mean(x, axis=(2, 3), keepdims=True)

    # 1) Default path (single block, full-H*W reduction).
    out = jax.block_until_ready(global_avg_pool2d(x))
    assert out.shape == (2, 4, 1, 1)
    assert jnp.allclose(out, ref, atol=1e-5, rtol=1e-5)

    # 2) Force the chunked-H*W accumulator path (hw=256 split into 2 chunks).
    out2 = jax.block_until_ready(global_avg_pool2d(x, max_block_bytes=4096))
    assert jnp.allclose(out2, ref, atol=1e-5, rtol=1e-5)

    # 3) Chunked path with a ragged reduction axis (hw=225, masked tail).
    key2 = jax.random.PRNGKey(0)
    y = jax.random.normal(key2, (2, 4, 15, 15), dtype=jnp.float32)
    ref_y = jnp.mean(y, axis=(2, 3), keepdims=True)
    out3 = jax.block_until_ready(global_avg_pool2d(y, max_block_bytes=4096))
    assert jnp.allclose(out3, ref_y, atol=1e-5, rtol=1e-5)

    print("KERNEL_OK")
</pallas_src>

<mosaic_0001>
module attributes {stable_mosaic.version = 11 : i64} {
  func.func @_gap_kernel(%arg0: i32, %arg1: memref<8x256xf32, #tpu.memory_space<vmem>>, %arg2: memref<1x8xf32, #tpu.memory_space<vmem>>) attributes {dimension_semantics = [#tpu.dimension_semantics<parallel>], iteration_bounds = array<i64: 1>, scalar_prefetch = 0 : i64, scratch_operands = 0 : i64, tpu.core_type = #tpu.core_type<tc>, window_params = [{transform_indices = @transform_0, window_bounds = array<i64: 8, 256>}, {transform_indices = @transform_1, window_bounds = array<i64: 1, 8>}]} {
    %c0 = arith.constant 0 : index
    %c0_0 = arith.constant 0 : index
    %0 = vector.load %arg1[%c0, %c0_0] : memref<8x256xf32, #tpu.memory_space<vmem>>, vector<8x256xf32>
    %cst = arith.constant dense<0.000000e+00> : vector<8xf32>
    %1 = vector.multi_reduction <add>, %0, %cst [1] : vector<8x256xf32> to vector<8xf32>
    %cst_1 = arith.constant 3.906250e-03 : f32
    %2 = vector.broadcast %cst_1 : f32 to vector<8xf32>
    %3 = arith.mulf %1, %2 : vector<8xf32>
    %4 = vector.shape_cast %3 : vector<8xf32> to vector<1x8xf32>
    %c0_2 = arith.constant 0 : index
    %c0_3 = arith.constant 0 : index
    %5 = vector.load %arg2[%c0_2, %c0_3] : memref<1x8xf32, #tpu.memory_space<vmem>>, vector<1x8xf32>
    tpu.vector_store %arg2[%c0_2, %c0_3], %4 {strides = array<i32>} : memref<1x8xf32, #tpu.memory_space<vmem>>, vector<1x8xf32>,
    return
  }
  func.func @transform_0(%arg0: i32) -> (i32, i32) {
    %c0_i32 = arith.constant 0 : i32
    %c0_i32_0 = arith.constant 0 : i32
    return %arg0, %c0_i32 : i32, i32
  }
  func.func @transform_1(%arg0: i32) -> (i32, i32) {
    %c0_i32 = arith.constant 0 : i32
    %c0_i32_0 = arith.constant 0 : i32
    return %c0_i32, %arg0 : i32, i32
  }
}

</mosaic_0001>

<llo_original>
// kernel: tpu_custom_call.1
$region0: #{tpu_custom_call.1}
  #allocation0 [shape = 'u32[]', space=smem, size = 0x4, offset = 0x4, fixed_abs, tag = 'smem constant byte address 0x4 - core index']
  #allocation1 [shape = 'u32[144,128]{1,0:T(1,128)}', space=vmem, size = 0x12000, scoped, tag = 'internal scratch']
  %s0 = inlined_call_operand.hbm [shape: f32[8,256], index: 0, kind: input, shape index: {}]
  %s1 = inlined_call_operand.hbm [shape: f32[1,8], index: 1, kind: output, shape index: {}]
  %s2 = sld [smem:[#allocation0]]
  $region18: #{tpu_custom_call.1} parent=0
    _
  %s4 = ssub.s32 1, %s2
  %s5 = scalar_select 0, %s4, %s2
  $region1: #{tpu_custom_call.1} parent=0
    #allocation2 [shape = 'u8[8192]{0}', space=vmem, size = 0x2000, scoped, tag = 'input window, operand 0, single buffered']
    #allocation3 [shape = 's32[1]{0}', space=sflag, size = 0x4, scoped, tag = 'scoped memory for tpu_custom_call.1']
    #allocation4 [shape = 's32[1]{0}', space=sflag, size = 0x4, scoped, tag = 'scoped memory for tpu_custom_call.1']
    #allocation5 [shape = 'u8[512]{0}', space=vmem, size = 0x400, scoped, tag = 'output window, operand 0, single buffered']
    %6 = vsyncpa [#allocation3], 0
    %7 = vsyncpa [#allocation4], 0
    // Predicated region
    $region2: #{tpu_custom_call.1} parent=1 // pred_check
      _
    $region3: #{tpu_custom_call.1} parent=1 // pred_check_branch
      %9 = sbr.rel (0) target = $region5
    $region4: #{tpu_custom_call.1} parent=1 // pred_region
      %s11 = ssub.s32 256, 256
      %12 = vsyncadd [#allocation3], %s11
      %s14 = sshll.u32 [#allocation2], 4
      %s15 = int_to_ptr.vmem [resolvable:$true] %s14
      %17 = dma.hbm_to_vmem [thread:$0]  %s0, 256, %s15, [#allocation3]
    $region5: #{tpu_custom_call.1} parent=1 // pred_fallthru
      _
    // Predicated region
    $region6: #{tpu_custom_call.1} parent=1 // pred_check
      _
    $region7: #{tpu_custom_call.1} parent=1 // pred_check_branch
      %19 = sbr.rel (0) target = $region9
    $region8: #{tpu_custom_call.1} parent=1 // pred_region
      %20 = dma.done [#allocation3], 256
    $region9: #{tpu_custom_call.1} parent=1 // pred_fallthru
      _
    %v21 = vld [vmem:[#allocation2] sm:$0xff]
    %v22 = vld [vmem:[#allocation2 + $0x8] sm:$0xff]
    %v23 = vadd.f32 %v21, %v22
    %24 = vadd.xlane.f32.xlu0 %v23
    %v25 = vpop.xlane.xlu0 %24
    %v26 = vmul.f32 %v25, 0.00390625
    %v28 = vlaneseq
    %v29 = vand.u32 %v28, 127
    %v30 = vlaneseq
    %v31 = vshrl.u32 %v30, 7
    %v32 = vsub.s32 %v29, %v31
    %v33 = vrot.slane %v26, %v32
    %vm35 = vcmask 57344
    %36 = vst.msk [vmem:[#allocation5] sm:$0x1] %vm35, %v33
    // Predicated region
    $region10: #{tpu_custom_call.1} parent=1 // pred_check
      _
    $region11: #{tpu_custom_call.1} parent=1 // pred_check_branch
      %38 = sbr.rel (0) target = $region13
    $region12: #{tpu_custom_call.1} parent=1 // pred_region
      %s40 = ssub.s32 16, 16
      %41 = vsyncadd [#allocation4], %s40
      %s43 = sshll.u32 [#allocation5], 4
      %s44 = int_to_ptr.vmem [resolvable:$true] %s43
      %46 = dma.vmem_to_hbm [thread:$0]  %s44, 16, %s1, [#allocation4]
    $region13: #{tpu_custom_call.1} parent=1 // pred_fallthru
      _
    // Predicated region
    $region14: #{tpu_custom_call.1} parent=1 // pred_check
      _
    $region15: #{tpu_custom_call.1} parent=1 // pred_check_branch
      %48 = sbr.rel (0) target = $region17
    $region16: #{tpu_custom_call.1} parent=1 // pred_region
      %49 = dma.done [#allocation4], 16
    $region17: #{tpu_custom_call.1} parent=1 // pred_fallthru
      _
    %50 = vsyncpa [#allocation3], 1
    %51 = vsyncpa [#allocation4], 1

</llo_original>
